<compile_context>
chip_gen: v5e
topology: v5e:2x2
jax: 0.10.0
libtpu: 0.0.40
codegen_flags: <defaults>
</compile_context>

<pallas_src>
import jax
import jax.numpy as jnp
from jax.experimental import pallas as pl
from jax.experimental.pallas import tpu as pltpu


def _round_up(x, m):
    return ((x + m - 1) // m) * m


def _dqn_kernel(x_ref, w1_ref, b1_ref, w2_ref, b2_ref, o_ref):
    # hidden = relu(x @ W1 + b1) -- MXU matmul with f32 accumulation.
    h = jnp.dot(x_ref[...], w1_ref[...], preferred_element_type=jnp.float32)
    # bias-add + ReLU on the f32 accumulator (VPU); biases are always f32.
    h = jnp.maximum(h + b1_ref[...], 0.0)
    # out = hidden @ W2 + b2 -- cast to the narrow MXU dtype only at the dot input.
    out = jnp.dot(h.astype(w2_ref.dtype), w2_ref[...],
                  preferred_element_type=jnp.float32)
    out = out + b2_ref[...]
    o_ref[...] = out.astype(o_ref.dtype)


def dqn_forward(x, w1, b1, w2, b2, *, block_b=512, compute_dtype=jnp.bfloat16):
    """Pallas DQN forward.

    x:  (B, In)   w1: (In, H)   b1: (1, H)   w2: (H, Out)   b2: (1, Out)
    block_b:       batch tile size cap (rounded to a multiple of 8).
    compute_dtype: narrow dtype for MXU operands (default bf16); accumulation,
                   bias-add and ReLU stay in f32.  Pass None for exact f32.
    Returns (B, Out) in x's original dtype.
    """
    B, in_dim = x.shape
    hid = w1.shape[1]
    out_dim = w2.shape[1]
    out_dtype = x.dtype

    # ---- output lane handling: pad to 128 only when overhead is small ----
    out_pad = _round_up(max(out_dim, 1), 128)
    lane_dense = out_pad * 4 <= out_dim * 5          # <= 25% padding overhead
    out_eff = out_pad if lane_dense else out_dim     # else: masked store, no slice
    if out_eff != out_dim:
        w2 = jnp.pad(w2, ((0, 0), (0, out_eff - out_dim)))
        b2 = jnp.pad(b2, ((0, 0), (0, out_eff - out_dim)))

    # ---- batch tile: multiple of 8, capped by block_b and by ~ceil(B/2)
    #      so grid >= 2 whenever the batch can split (v7x: 2 TensorCores) ----
    tb = max(8, min(_round_up(block_b, 8), _round_up(pl.cdiv(B, 2), 8)))
    grid_b = pl.cdiv(B, tb)   # ragged last tile handled by Pallas boundary masking

    # ---- narrow MXU operands (default bf16); biases / accumulation stay f32 ----
    if compute_dtype is not None:
        x = x.astype(compute_dtype)
        w1 = w1.astype(compute_dtype)
        w2 = w2.astype(compute_dtype)
    b1 = b1.astype(jnp.float32)
    b2 = b2.astype(jnp.float32)

    # ---- explicit VMEM budget: double-buffered x/out tiles + resident weights
    #      (max(...,128) accounts for lane-layout padding of narrow dims) ----
    xb = jnp.dtype(x.dtype).itemsize
    wb = jnp.dtype(w1.dtype).itemsize
    ob = jnp.dtype(out_dtype).itemsize
    budget = (2 * tb * max(in_dim, 128) * xb
              + 2 * tb * max(out_eff, 128) * ob
              + 2 * (in_dim * hid + hid * out_eff) * wb
              + 2 * (hid + out_eff) * 4
              + tb * max(hid, 128) * 4 + tb * max(out_eff, 128) * 4)
    vmem_limit = int(min(64 << 20, max(2 * budget + (4 << 20), 32 << 20)))

    # TODO(synk): single-buffer the constant-index weight/bias specs
    #             (pipeline_mode=pl.Buffered(1)) once verified across target gens.
    # TODO(synk): add a hidden/output-column grid axis (K/N tiling with an f32
    #             accumulator scratch + pl.when init/finalize) for hidden sizes
    #             whose resident weights exceed v7x's 64 MiB VMEM.
    out = pl.pallas_call(
        _dqn_kernel,
        out_shape=jax.ShapeDtypeStruct((B, out_eff), out_dtype),
        grid_spec=pltpu.PrefetchScalarGridSpec(
            num_scalar_prefetch=0,
            grid=(grid_b,),
            in_specs=[
                pl.BlockSpec((tb, in_dim), lambda i: (i, 0)),   # x: tiled over batch
                pl.BlockSpec(w1.shape, lambda i: (0, 0)),       # weights stay resident
                pl.BlockSpec(b1.shape, lambda i: (0, 0)),
                pl.BlockSpec(w2.shape, lambda i: (0, 0)),
                pl.BlockSpec(b2.shape, lambda i: (0, 0)),
            ],
            out_specs=pl.BlockSpec((tb, out_eff), lambda i: (i, 0)),
        ),
        compiler_params=pltpu.CompilerParams(
            dimension_semantics=("parallel",),   # shard batch tiles across TCs
            vmem_limit_bytes=vmem_limit,
        ),
    )(x, w1, b1, w2, b2)

    if out_eff != out_dim:
        out = out[:, :out_dim]
    return out


def init_dqn_params(key, input_size, hidden_size, output_size, dtype=jnp.float32):
    """Deterministic init mimicking torch.nn.Linear default (U[-1/sqrt(fan_in), ...])."""
    k1, k2, k3, k4 = jax.random.split(key, 4)
    lim1 = 1.0 / jnp.sqrt(jnp.asarray(input_size, dtype))
    lim2 = 1.0 / jnp.sqrt(jnp.asarray(hidden_size, dtype))
    w1 = jax.random.uniform(k1, (input_size, hidden_size), dtype, -lim1, lim1)
    b1 = jax.random.uniform(k2, (1, hidden_size), dtype, -lim1, lim1)
    w2 = jax.random.uniform(k3, (hidden_size, output_size), dtype, -lim2, lim2)
    b2 = jax.random.uniform(k4, (1, output_size), dtype, -lim2, lim2)
    return w1, b1, w2, b2


def dqn_reference(x, w1, b1, w2, b2):
    h = jnp.maximum(x @ w1 + b1, 0.0)
    return h @ w2 + b2


if __name__ == "__main__":
    batch, input_size, hidden_size, output_size = 8, 16, 32, 4

    key = jax.random.PRNGKey(0)
    kx, kp = jax.random.split(key)
    x = jax.random.normal(kx, (batch, input_size), jnp.float32)
    w1, b1, w2, b2 = init_dqn_params(kp, input_size, hidden_size, output_size)
    ref = dqn_reference(x, w1, b1, w2, b2)

    # --- default path: bf16 MXU operands, f32 accumulation, unpadded output ---
    out = jax.block_until_ready(dqn_forward(x, w1, b1, w2, b2))
    assert out.shape == (batch, output_size)
    assert out.dtype == x.dtype
    assert jnp.allclose(out, ref, atol=1e-1, rtol=1e-1)

    # --- exact f32 path ---
    out_f32 = jax.block_until_ready(
        dqn_forward(x, w1, b1, w2, b2, compute_dtype=None))
    assert jnp.allclose(out_f32, ref, atol=1e-5, rtol=1e-5)

    # --- ragged batch (B=300 -> TB=152, grid=2): exercises Pallas boundary
    #     masking with no wrapper-side pad/slice, f32 for tight comparison ---
    xb = jax.random.normal(jax.random.PRNGKey(1), (300, input_size), jnp.float32)
    refb = dqn_reference(xb, w1, b1, w2, b2)
    out_b = jax.block_until_ready(
        dqn_forward(xb, w1, b1, w2, b2, compute_dtype=None))
    assert out_b.shape == (300, output_size)
    assert jnp.allclose(out_b, refb, atol=1e-5, rtol=1e-5)

    # --- larger ragged batch on the default bf16 path (grid >= 2) ---
    xc = jax.random.normal(jax.random.PRNGKey(2), (300, input_size), jnp.float32)
    out_c = jax.block_until_ready(dqn_forward(xc, w1, b1, w2, b2))
    assert out_c.shape == (300, output_size)
    assert jnp.allclose(out_c, dqn_reference(xc, w1, b1, w2, b2),
                        atol=1e-1, rtol=1e-1)

    print("KERNEL_OK")
</pallas_src>

<mosaic_0001>
module attributes {stable_mosaic.version = 11 : i64} {
  func.func @_dqn_kernel(%arg0: i32, %arg1: memref<8x16xbf16, #tpu.memory_space<vmem>>, %arg2: memref<16x32xbf16, #tpu.memory_space<vmem>>, %arg3: memref<1x32xf32, #tpu.memory_space<vmem>>, %arg4: memref<32x4xbf16, #tpu.memory_space<vmem>>, %arg5: memref<1x4xf32, #tpu.memory_space<vmem>>, %arg6: memref<8x4xf32, #tpu.memory_space<vmem>>) attributes {dimension_semantics = [#tpu.dimension_semantics<parallel>], iteration_bounds = array<i64: 1>, scalar_prefetch = 0 : i64, scratch_operands = 0 : i64, tpu.core_type = #tpu.core_type<tc>, window_params = [{transform_indices = @transform_0, window_bounds = array<i64: 8, 16>}, {pipeline_mode = #tpu.pipeline_mode<synchronous>, transform_indices = @transform_1, window_bounds = array<i64: 16, 32>}, {pipeline_mode = #tpu.pipeline_mode<synchronous>, transform_indices = @transform_2, window_bounds = array<i64: 1, 32>}, {pipeline_mode = #tpu.pipeline_mode<synchronous>, transform_indices = @transform_3, window_bounds = array<i64: 32, 4>}, {pipeline_mode = #tpu.pipeline_mode<synchronous>, transform_indices = @transform_4, window_bounds = array<i64: 1, 4>}, {transform_indices = @transform_5, window_bounds = array<i64: 8, 4>}]} {
    %c0 = arith.constant 0 : index
    %c0_0 = arith.constant 0 : index
    %0 = vector.load %arg1[%c0, %c0_0] : memref<8x16xbf16, #tpu.memory_space<vmem>>, vector<8x16xbf16>
    %c0_1 = arith.constant 0 : index
    %c0_2 = arith.constant 0 : index
    %1 = vector.load %arg2[%c0_1, %c0_2] : memref<16x32xbf16, #tpu.memory_space<vmem>>, vector<16x32xbf16>
    %cst = arith.constant dense<0.000000e+00> : vector<8x32xf32>
    %2 = tpu.matmul %0, %1, %cst {dimension_numbers = #tpu.dot_dimension_numbers<[1], [0], [0], [1], [0, 0, 1, 1], [], []>} : vector<8x16xbf16>, vector<16x32xbf16>, vector<8x32xf32> -> vector<8x32xf32>
    %c0_3 = arith.constant 0 : index
    %c0_4 = arith.constant 0 : index
    %3 = vector.load %arg3[%c0_3, %c0_4] : memref<1x32xf32, #tpu.memory_space<vmem>>, vector<1x32xf32>
    %4 = vector.broadcast %3 : vector<1x32xf32> to vector<8x32xf32>
    %5 = arith.addf %2, %4 : vector<8x32xf32>
    %cst_5 = arith.constant 0.000000e+00 : f32
    %6 = vector.broadcast %cst_5 : f32 to vector<8x32xf32>
    %7 = arith.maximumf %5, %6 : vector<8x32xf32>
    %8 = arith.truncf %7 : vector<8x32xf32> to vector<8x32xbf16>
    %c0_6 = arith.constant 0 : index
    %c0_7 = arith.constant 0 : index
    %9 = vector.load %arg4[%c0_6, %c0_7] : memref<32x4xbf16, #tpu.memory_space<vmem>>, vector<32x4xbf16>
    %cst_8 = arith.constant dense<0.000000e+00> : vector<8x4xf32>
    %10 = tpu.matmul %8, %9, %cst_8 {dimension_numbers = #tpu.dot_dimension_numbers<[1], [0], [0], [1], [0, 0, 1, 1], [], []>} : vector<8x32xbf16>, vector<32x4xbf16>, vector<8x4xf32> -> vector<8x4xf32>
    %c0_9 = arith.constant 0 : index
    %c0_10 = arith.constant 0 : index
    %11 = vector.load %arg5[%c0_9, %c0_10] : memref<1x4xf32, #tpu.memory_space<vmem>>, vector<1x4xf32>
    %12 = vector.broadcast %11 : vector<1x4xf32> to vector<8x4xf32>
    %13 = arith.addf %10, %12 : vector<8x4xf32>
    %c0_11 = arith.constant 0 : index
    %c0_12 = arith.constant 0 : index
    %14 = vector.load %arg6[%c0_11, %c0_12] : memref<8x4xf32, #tpu.memory_space<vmem>>, vector<8x4xf32>
    tpu.vector_store %arg6[%c0_11, %c0_12], %13 {strides = array<i32>} : memref<8x4xf32, #tpu.memory_space<vmem>>, vector<8x4xf32>,
    return
  }
  func.func @transform_0(%arg0: i32) -> (i32, i32) {
    %c0_i32 = arith.constant 0 : i32
    %c0_i32_0 = arith.constant 0 : i32
    return %arg0, %c0_i32 : i32, i32
  }
  func.func @transform_1(%arg0: i32) -> (i32, i32) {
    %c0_i32 = arith.constant 0 : i32
    %c0_i32_0 = arith.constant 0 : i32
    %c0_i32_1 = arith.constant 0 : i32
    return %c0_i32, %c0_i32_0 : i32, i32
  }
  func.func @transform_2(%arg0: i32) -> (i32, i32) {
    %c0_i32 = arith.constant 0 : i32
    %c0_i32_0 = arith.constant 0 : i32
    %c0_i32_1 = arith.constant 0 : i32
    return %c0_i32, %c0_i32_0 : i32, i32
  }
  func.func @transform_3(%arg0: i32) -> (i32, i32) {
    %c0_i32 = arith.constant 0 : i32
    %c0_i32_0 = arith.constant 0 : i32
    %c0_i32_1 = arith.constant 0 : i32
    return %c0_i32, %c0_i32_0 : i32, i32
  }
  func.func @transform_4(%arg0: i32) -> (i32, i32) {
    %c0_i32 = arith.constant 0 : i32
    %c0_i32_0 = arith.constant 0 : i32
    %c0_i32_1 = arith.constant 0 : i32
    return %c0_i32, %c0_i32_0 : i32, i32
  }
  func.func @transform_5(%arg0: i32) -> (i32, i32) {
    %c0_i32 = arith.constant 0 : i32
    %c0_i32_0 = arith.constant 0 : i32
    return %arg0, %c0_i32 : i32, i32
  }
}

</mosaic_0001>

<llo_original>
// kernel: tpu_custom_call.1
$region0: #{tpu_custom_call.1}
  #allocation0 [shape = 'u32[]', space=smem, size = 0x4, offset = 0x4, fixed_abs, tag = 'smem constant byte address 0x4 - core index']
  #allocation1 [shape = 'u32[72,128]{1,0:T(1,128)}', space=vmem, size = 0x9000, scoped, tag = 'internal scratch']
  %s0 = inlined_call_operand.vmem [shape: bf16[8,16], index: 0, kind: input, shape index: {}]
  %s1 = inlined_call_operand.vmem [shape: bf16[16,32], index: 1, kind: input, shape index: {}]
  %s2 = inlined_call_operand.vmem [shape: f32[1,32], index: 2, kind: input, shape index: {}]
  %s3 = inlined_call_operand.vmem [shape: bf16[32,4], index: 3, kind: input, shape index: {}]
  %s4 = inlined_call_operand.vmem [shape: f32[1,4], index: 4, kind: input, shape index: {}]
  %s5 = inlined_call_operand.vmem [shape: f32[8,4], index: 5, kind: output, shape index: {}]
  %s6 = sld [smem:[#allocation0]]
  $region30: #{tpu_custom_call.1} parent=0
    _
  %s8 = ssub.s32 1, %s6
  %s9 = scalar_select 0, %s8, %s6
  // Predicated region
  $region2: #{tpu_custom_call.1} parent=0 // pred_check
    _
  $region3: #{tpu_custom_call.1} parent=0 // pred_check_branch
    %11 = sbr.rel (0) target = $region5
  $region4: #{tpu_custom_call.1} parent=0 // pred_region
    _
  $region5: #{tpu_custom_call.1} parent=0 // pred_fallthru
    _
  // Predicated region
  $region6: #{tpu_custom_call.1} parent=0 // pred_check
    _
  $region7: #{tpu_custom_call.1} parent=0 // pred_check_branch
    %13 = sbr.rel (0) target = $region9
  $region8: #{tpu_custom_call.1} parent=0 // pred_region
    _
  $region9: #{tpu_custom_call.1} parent=0 // pred_fallthru
    _
  // Predicated region
  $region10: #{tpu_custom_call.1} parent=0 // pred_check
    _
  $region11: #{tpu_custom_call.1} parent=0 // pred_check_branch
    %15 = sbr.rel (0) target = $region13
  $region12: #{tpu_custom_call.1} parent=0 // pred_region
    _
  $region13: #{tpu_custom_call.1} parent=0 // pred_fallthru
    _
  // Predicated region
  $region14: #{tpu_custom_call.1} parent=0 // pred_check
    _
  $region15: #{tpu_custom_call.1} parent=0 // pred_check_branch
    %17 = sbr.rel (0) target = $region17
  $region16: #{tpu_custom_call.1} parent=0 // pred_region
    _
  $region17: #{tpu_custom_call.1} parent=0 // pred_fallthru
    _
  // Predicated region
  $region18: #{tpu_custom_call.1} parent=0 // pred_check
    _
  $region19: #{tpu_custom_call.1} parent=0 // pred_check_branch
    %19 = sbr.rel (0) target = $region21
  $region20: #{tpu_custom_call.1} parent=0 // pred_region
    _
  $region21: #{tpu_custom_call.1} parent=0 // pred_fallthru
    _
  %v21 = vld [vmem:[%s0] sm:$0xf]
  %v22 = vld [vmem:[%s1] sm:$0xf]
  %v23 = vld [vmem:[%s1 + $0x4] sm:$0xf]
  %v24 = vld [vmem:[%s2] sm:$0x1]
  %v26 = vperm.slane %v24, 0
  %v30 = vunpack.c.l.b16 %v22
  %v31 = vunpack.c.l.b16 %v23
  %v32 = vpack.c.b16 %v31, %v30
  %vm34 = vcmask 130048
  %v36 = vsel %vm34, %v21, 0
  %38 = vmatpush.bf16.msra.mxu0 0
  %39 = vmatpush.bf16.msra.mxu0 0
  %40 = vmatpush.bf16.msra.mxu0 0
  %41 = vmatpush.bf16.msra.mxu0 0
  %42 = vmatpush.bf16.msra.mxu0 0
  %43 = vmatpush.bf16.msra.mxu0 0
  %44 = vmatpush.bf16.msra.mxu0 0
  %45 = vmatpush.bf16.msra.mxu0 %v32
  %46 = vmatmul.bf16.gmra.mxu0 %v36
  %v47 = vpop.f32.mrf.mxu0
  %v48 = vadd.f32 %v26, %v47
  %v49 = vpop.f32.mrf.mxu0
  %50 = vdwg.mxu0
  %v51 = vmax.f32 %v48, 0.0
  %v52 = vpack.c.bf16 %v51, %v51
  %v53 = vld [vmem:[%s3] sm:$0xf]
  %v54 = vld [vmem:[%s3 + $0x4] sm:$0xf]
  %v55 = vld [vmem:[%s3 + $0x8] sm:$0xf]
  %v56 = vld [vmem:[%s3 + $0xc] sm:$0xf]
  %v57 = vld [vmem:[%s4] sm:$0x1]
  %v59 = vperm.slane %v57, 0
  %v65 = vunpack.c.l.b16 %v53
  %v66 = vunpack.c.l.b16 %v54
  %v67 = vunpack.c.l.b16 %v55
  %v68 = vunpack.c.l.b16 %v56
  %v69 = vpack.c.b16 %v66, %v65
  %v70 = vpack.c.b16 %v68, %v67
  %vm73 = vcmask 261120
  %v75 = vsel %vm73, %v52, 0
  %77 = vmatpush.bf16.msra.mxu0 0
  %78 = vmatpush.bf16.msra.mxu0 0
  %79 = vmatpush.bf16.msra.mxu0 0
  %80 = vmatpush.bf16.msra.mxu0 0
  %81 = vmatpush.bf16.msra.mxu0 0
  %82 = vmatpush.bf16.msra.mxu0 0
  %83 = vmatpush.bf16.msra.mxu0 %v70
  %84 = vmatpush.bf16.msra.mxu0 %v69
  %85 = vmatmul.bf16.gmra.mxu0 %v75
  %v86 = vpop.f32.mrf.mxu0
  %v87 = vadd.f32 %v59, %v86
  %v88 = vpop.f32.mrf.mxu0
  %89 = vdwg.mxu0
  %vm90 = vcmask 31744
  %91 = vst.msk [vmem:[%s5] sm:$0xff] %vm90, %v87
  // Predicated region
  $region22: #{tpu_custom_call.1} parent=0 // pred_check
    _
  $region23: #{tpu_custom_call.1} parent=0 // pred_check_branch
    %93 = sbr.rel (0) target = $region25
  $region24: #{tpu_custom_call.1} parent=0 // pred_region
    _
  $region25: #{tpu_custom_call.1} parent=0 // pred_fallthru
    _
  // Predicated region
  $region26: #{tpu_custom_call.1} parent=0 // pred_check
    _
  $region27: #{tpu_custom_call.1} parent=0 // pred_check_branch
    %95 = sbr.rel (0) target = $region29
  $region28: #{tpu_custom_call.1} parent=0 // pred_region
    _
  $region29: #{tpu_custom_call.1} parent=0 // pred_fallthru
    _

</llo_original>
